<compile_context>
chip_gen: v7x
topology: tpu7x:2x2x1
jax: 0.10.0
libtpu: 0.0.40
codegen_flags: <defaults>
</compile_context>

<pallas_src>
import functools

import jax
import jax.numpy as jnp
from jax.experimental import pallas as pl
from jax.experimental.pallas import tpu as pltpu


def _double_conv_kernel(x_ref, w1_ref, b1_ref, w2_ref, b2_ref, o_ref, mid_ref, *, th):
    # x_ref  : (H+2, K1)      bf16  ky-packed, spatially padded input rows
    # w1_ref : (K1, L1)       bf16  banded conv1 weights (BN1 scale folded in)
    # b1_ref : (1, L1)        f32   folded BN1 bias, tiled per column, pad cols zeroed
    # w2_ref : (3, L1, L2)    bf16  banded conv2 weights per ky (BN2 scale folded in)
    # b2_ref : (1, L2)        f32   folded BN2 bias, tiled per column
    # o_ref  : (TH, L2)       bf16  output row tile, L2 = W*Cout (lane-dense)
    # mid_ref: (TH+2, L1)     bf16  conv1 output tile + 1-row halo, L1 = (W+2)*Cmid
    t = pl.program_id(1)
    nt = pl.num_programs(1)

    row0 = t * th
    if th % 8 == 0:  # static: TH is a multiple of 8 (or T == 1 and row0 == 0)
        row0 = pl.multiple_of(row0, 8)

    # ---- conv1 + folded BN1: ONE matmul over K1 = 3*(W+4)*Cin ----
    lhs = x_ref[pl.ds(row0, th + 2), :]
    y1 = jnp.dot(lhs, w1_ref[...], preferred_element_type=jnp.float32)
    y1 = jnp.maximum(y1 + b1_ref[...], 0.0)

    # conv2's zero-padding rows: top halo row only on the first tile, bottom halo
    # row only on the last tile.  (Padding *columns* are already zero because the
    # corresponding banded-weight columns and bias entries are zero host-side.)
    rows = jax.lax.broadcasted_iota(jnp.int32, y1.shape, 0)
    row_ok = ((rows >= 1) | (t > 0)) & ((rows <= th) | (t < nt - 1))
    y1 = jnp.where(row_ok, y1, 0.0)

    # Single aligned full-extent store of the lane-dense intermediate.
    mid_ref[...] = y1.astype(mid_ref.dtype)

    # ---- conv2 + folded BN2: 3 matmuls (one per ky), K = L1 = (W+2)*Cmid ----
    acc = jnp.zeros(o_ref.shape, jnp.float32)
    for dy in range(3):
        acc = acc + jnp.dot(mid_ref[dy:dy + th, :], w2_ref[dy],
                            preferred_element_type=jnp.float32)
    o_ref[...] = jnp.maximum(acc + b2_ref[...], 0.0).astype(o_ref.dtype)


def double_conv_pallas(x_nchw, params, *, row_tile=32):
    """x_nchw: (N, Cin, H, W) float32.  Returns (N, Cout, H, W) float32."""
    N, Cin, H, W = x_nchw.shape
    w1, b1, g1, be1, rm1, rv1, w2, b2, g2, be2, rm2, rv2 = params
    Cm = w1.shape[0]   # w1: (Cm, Cin, 3, 3) PyTorch layout
    Co = w2.shape[0]   # w2: (Co, Cm, 3, 3)
    eps = 1e-5

    # Tile height: largest multiple-of-8 divisor of H <= row_tile, else whole image.
    cands = [d for d in range(8, min(H, row_tile) + 1, 8) if H % d == 0]
    TH = max(cands) if cands else H
    T = H // TH

    K1 = 3 * (W + 4) * Cin    # conv1 GEMM contraction width
    L1 = (W + 2) * Cm         # padded y1 row width = conv2 contraction width
    L2 = W * Co               # output row width (lane-dense when W*Co >= 128)

    # ---- fold conv bias + eval-mode BN into per-channel scale / bias ----
    s1 = g1 / jnp.sqrt(rv1 + eps)
    bb1 = be1 + (b1 - rm1) * s1
    s2 = g2 / jnp.sqrt(rv2 + eps)
    bb2 = be2 + (b2 - rm2) * s2

    # ---- input: NCHW -> NHWC, pad=2 spatially, pack the 3 ky rows into lanes ----
    x = jnp.transpose(x_nchw, (0, 2, 3, 1))
    xp = jnp.pad(x, ((0, 0), (2, 2), (2, 2), (0, 0)))
    xbig = jnp.stack([xp[:, dy:dy + H + 2] for dy in range(3)], axis=2)
    xbig = xbig.reshape(N, H + 2, K1).astype(jnp.bfloat16)

    # ---- banded GEMM weights (constant, built host-side) ----
    def band(win, wout):
        # band[d, a, p] = 1 iff a == p + d  (a: input column, p: output column)
        d = jnp.arange(3)[:, None, None]
        a = jnp.arange(win)[None, :, None]
        p = jnp.arange(wout)[None, None, :]
        return (a == p + d).astype(jnp.float32)

    # conv1: (ky, w', ci) x (wp, cm)  -- BN1 scale folded, padding columns zeroed.
    w1eff = jnp.transpose(w1, (2, 3, 1, 0)) * s1[None, None, None, :]   # (ky,kx,ci,cm)
    w1big = jnp.einsum('dap,ydcm->yacpm', band(W + 4, W + 2), w1eff)    # (3,W+4,Cin,W+2,Cm)
    colmask = jnp.concatenate([jnp.zeros((1,)), jnp.ones((W,)), jnp.zeros((1,))])
    w1big = w1big * colmask[None, None, None, :, None]
    w1big = w1big.reshape(K1, L1).astype(jnp.bfloat16)
    b1row = (jnp.tile(bb1, W + 2) * jnp.repeat(colmask, Cm)).reshape(1, L1)
    b1row = b1row.astype(jnp.float32)

    # conv2: per ky, (wp, cm) x (w, co)  -- BN2 scale folded.
    w2eff = jnp.transpose(w2, (2, 3, 1, 0)) * s2[None, None, None, :]   # (ky,kx,cm,co)
    w2big = jnp.einsum('dpw,ydmo->ypmwo', band(W + 2, W), w2eff)        # (3,W+2,Cm,W,Co)
    w2big = w2big.reshape(3, L1, L2).astype(jnp.bfloat16)
    b2row = jnp.tile(bb2, W).reshape(1, L2).astype(jnp.float32)

    kernel = functools.partial(_double_conv_kernel, th=TH)

    flops = 2 * N * T * ((TH + 2) * K1 * L1 + 3 * TH * L1 * L2)
    bytes_accessed = (xbig.size * 2 + w1big.size * 2 + w2big.size * 2
                      + b1row.size * 4 + b2row.size * 4 + N * H * L2 * 2)

    out2d = pl.pallas_call(
        kernel,
        out_shape=jax.ShapeDtypeStruct((N, H, L2), jnp.bfloat16),
        grid_spec=pltpu.PrefetchScalarGridSpec(
            num_scalar_prefetch=0,
            grid=(N, T),
            in_specs=[
                # Full padded, ky-packed image resident per n (block index constant
                # over t); rows are sliced in-kernel with an 8-aligned dynamic start.
                pl.BlockSpec((None, H + 2, K1), lambda n, t: (n, 0, 0)),
                pl.BlockSpec((K1, L1), lambda n, t: (0, 0)),
                pl.BlockSpec((1, L1), lambda n, t: (0, 0)),
                pl.BlockSpec((3, L1, L2), lambda n, t: (0, 0, 0)),
                pl.BlockSpec((1, L2), lambda n, t: (0, 0)),
            ],
            out_specs=pl.BlockSpec((None, TH, L2), lambda n, t: (n, t, 0)),
            scratch_shapes=[pltpu.VMEM((TH + 2, L1), jnp.bfloat16)],
        ),
        compiler_params=pltpu.CompilerParams(
            # t shares its (constant) input block -> keep it un-sharded; shard images.
            dimension_semantics=("parallel", "arbitrary"),
            vmem_limit_bytes=64 * 1024 * 1024),
        cost_estimate=pl.CostEstimate(flops=int(flops), transcendentals=0,
                                      bytes_accessed=int(bytes_accessed)),
    )(xbig, w1big, b1row, w2big, b2row)

    # (N, H, W*Co) bf16 -> (N, Co, H, W) f32 (module boundary adapter).
    out = out2d.reshape(N, H, W, Co).astype(jnp.float32)
    return jnp.transpose(out, (0, 3, 1, 2))


def _reference_double_conv(x_nchw, params):
    """Pure-JAX reference (eval-mode semantics), for correctness check."""
    w1, b1, g1, be1, rm1, rv1, w2, b2, g2, be2, rm2, rv2 = params

    def conv_bn_relu(x, w, b, g, be, rm, rv):
        y = jax.lax.conv_general_dilated(
            x, w, window_strides=(1, 1), padding=((1, 1), (1, 1)),
            dimension_numbers=("NCHW", "OIHW", "NCHW"))
        y = y + b[None, :, None, None]
        y = (y - rm[None, :, None, None]) / jnp.sqrt(rv[None, :, None, None] + 1e-5)
        y = y * g[None, :, None, None] + be[None, :, None, None]
        return jnp.maximum(y, 0.0)

    y = conv_bn_relu(x_nchw, w1, b1, g1, be1, rm1, rv1)
    y = conv_bn_relu(y, w2, b2, g2, be2, rm2, rv2)
    return y


def _init_params(key, in_ch, out_ch):
    ks = jax.random.split(key, 8)
    w1 = jax.random.normal(ks[0], (out_ch, in_ch, 3, 3), jnp.float32) * 0.1
    b1 = jax.random.normal(ks[1], (out_ch,), jnp.float32) * 0.1
    g1 = 1.0 + 0.1 * jax.random.normal(ks[2], (out_ch,), jnp.float32)
    be1 = 0.1 * jax.random.normal(ks[3], (out_ch,), jnp.float32)
    rm1 = 0.05 * jax.random.normal(ks[4], (out_ch,), jnp.float32)
    rv1 = 1.0 + 0.1 * jax.nn.softplus(jax.random.normal(ks[5], (out_ch,), jnp.float32))

    w2 = jax.random.normal(ks[6], (out_ch, out_ch, 3, 3), jnp.float32) * 0.1
    b2 = jax.random.normal(ks[7], (out_ch,), jnp.float32) * 0.1
    g2 = jnp.ones((out_ch,), jnp.float32)
    be2 = jnp.zeros((out_ch,), jnp.float32)
    rm2 = jnp.zeros((out_ch,), jnp.float32)
    rv2 = jnp.ones((out_ch,), jnp.float32)
    return (w1, b1, g1, be1, rm1, rv1, w2, b2, g2, be2, rm2, rv2)


if __name__ == "__main__":
    key = jax.random.PRNGKey(0)
    k_x, k_p = jax.random.split(key)

    N, Cin, Cout, H, W = 2, 4, 8, 16, 16
    x = jax.random.normal(k_x, (N, Cin, H, W), jnp.float32)
    params = _init_params(k_p, Cin, Cout)

    out = double_conv_pallas(x, params)
    out = jax.block_until_ready(out)

    ref = _reference_double_conv(x, params)
    assert out.shape == (N, Cout, H, W)
    # bf16 inputs/weights/output with f32 accumulation -> loose-ish tolerance.
    assert jnp.allclose(out, ref, rtol=5e-2, atol=5e-2), "mismatch vs JAX reference"

    print("KERNEL_OK")
</pallas_src>

<mosaic_0001>
module attributes {stable_mosaic.version = 11 : i64} {
  func.func @_double_conv_kernel(%arg0: i32, %arg1: i32, %arg2: memref<1x18x240xbf16, #tpu.memory_space<vmem>>, %arg3: memref<240x144xbf16, #tpu.memory_space<vmem>>, %arg4: memref<1x144xf32, #tpu.memory_space<vmem>>, %arg5: memref<3x144x128xbf16, #tpu.memory_space<vmem>>, %arg6: memref<1x128xf32, #tpu.memory_space<vmem>>, %arg7: memref<1x16x128xbf16, #tpu.memory_space<vmem>>, %arg8: memref<18x144xbf16, #tpu.memory_space<vmem>>) attributes {dimension_semantics = [#tpu.dimension_semantics<parallel>, #tpu.dimension_semantics<arbitrary>], iteration_bounds = array<i64: 2, 1>, scalar_prefetch = 0 : i64, scratch_operands = 1 : i64, tpu.core_type = #tpu.core_type<tc>, window_params = [{transform_indices = @transform_0, window_bounds = array<i64: 1, 18, 240>}, {pipeline_mode = #tpu.pipeline_mode<synchronous>, transform_indices = @transform_1, window_bounds = array<i64: 240, 144>}, {pipeline_mode = #tpu.pipeline_mode<synchronous>, transform_indices = @transform_2, window_bounds = array<i64: 1, 144>}, {pipeline_mode = #tpu.pipeline_mode<synchronous>, transform_indices = @transform_3, window_bounds = array<i64: 3, 144, 128>}, {pipeline_mode = #tpu.pipeline_mode<synchronous>, transform_indices = @transform_4, window_bounds = array<i64: 1, 128>}, {transform_indices = @transform_5, window_bounds = array<i64: 1, 16, 128>}]} {
    %c16_i32 = arith.constant 16 : i32
    %0 = arith.muli %arg1, %c16_i32 : i32
    %1 = tpu.assume_multiple %0, 8 : i32
    %c0 = arith.constant 0 : index
    %2 = arith.index_cast %1 : i32 to index
    %c0_0 = arith.constant 0 : index
    %3 = vector.load %arg2[%c0, %2, %c0_0] : memref<1x18x240xbf16, #tpu.memory_space<vmem>>, vector<1x18x240xbf16>
    %4 = vector.shape_cast %3 : vector<1x18x240xbf16> to vector<18x240xbf16>
    %c0_1 = arith.constant 0 : index
    %c0_2 = arith.constant 0 : index
    %5 = vector.load %arg3[%c0_1, %c0_2] : memref<240x144xbf16, #tpu.memory_space<vmem>>, vector<240x144xbf16>
    %cst = arith.constant dense<0.000000e+00> : vector<18x144xf32>
    %6 = tpu.matmul %4, %5, %cst {dimension_numbers = #tpu.dot_dimension_numbers<[1], [0], [0], [1], [0, 0, 1, 1], [], []>} : vector<18x240xbf16>, vector<240x144xbf16>, vector<18x144xf32> -> vector<18x144xf32>
    %c0_3 = arith.constant 0 : index
    %c0_4 = arith.constant 0 : index
    %7 = vector.load %arg4[%c0_3, %c0_4] : memref<1x144xf32, #tpu.memory_space<vmem>>, vector<1x144xf32>
    %8 = vector.broadcast %7 : vector<1x144xf32> to vector<18x144xf32>
    %9 = arith.addf %6, %8 : vector<18x144xf32>
    %cst_5 = arith.constant 0.000000e+00 : f32
    %10 = vector.broadcast %cst_5 : f32 to vector<18x144xf32>
    %11 = arith.maximumf %9, %10 : vector<18x144xf32>
    %12 = tpu.iota {dimensions = array<i32: 0>} : vector<18x144xi32>
    %c1_i32 = arith.constant 1 : i32
    %13 = vector.broadcast %c1_i32 : i32 to vector<18x144xi32>
    %14 = arith.cmpi sge, %12, %13 : vector<18x144xi32>
    %c0_i32 = arith.constant 0 : i32
    %15 = arith.cmpi sgt, %arg1, %c0_i32 : i32
    %16 = vector.broadcast %15 : i1 to vector<18x144xi1>
    %17 = arith.ori %14, %16 : vector<18x144xi1>
    %c16_i32_6 = arith.constant 16 : i32
    %18 = vector.broadcast %c16_i32_6 : i32 to vector<18x144xi32>
    %19 = arith.cmpi sle, %12, %18 : vector<18x144xi32>
    %c0_i32_7 = arith.constant 0 : i32
    %20 = arith.cmpi slt, %arg1, %c0_i32_7 : i32
    %21 = vector.broadcast %20 : i1 to vector<18x144xi1>
    %22 = arith.ori %19, %21 : vector<18x144xi1>
    %23 = arith.andi %17, %22 : vector<18x144xi1>
    %cst_8 = arith.constant 0.000000e+00 : f32
    %24 = vector.broadcast %cst_8 : f32 to vector<18x144xf32>
    %25 = arith.select %23, %11, %24 : vector<18x144xi1>, vector<18x144xf32>
    %26 = arith.truncf %25 : vector<18x144xf32> to vector<18x144xbf16>
    %c0_9 = arith.constant 0 : index
    %c0_10 = arith.constant 0 : index
    %27 = vector.load %arg8[%c0_9, %c0_10] : memref<18x144xbf16, #tpu.memory_space<vmem>>, vector<18x144xbf16>
    tpu.vector_store %arg8[%c0_9, %c0_10], %26 {strides = array<i32>} : memref<18x144xbf16, #tpu.memory_space<vmem>>, vector<18x144xbf16>,
    %cst_11 = arith.constant 0.000000e+00 : f32
    %28 = vector.broadcast %cst_11 : f32 to vector<16x128xf32>
    %c0_12 = arith.constant 0 : index
    %c0_13 = arith.constant 0 : index
    %29 = vector.load %arg8[%c0_12, %c0_13] : memref<18x144xbf16, #tpu.memory_space<vmem>>, vector<16x144xbf16>
    %c0_14 = arith.constant 0 : index
    %c0_15 = arith.constant 0 : index
    %c0_16 = arith.constant 0 : index
    %30 = vector.load %arg5[%c0_14, %c0_15, %c0_16] : memref<3x144x128xbf16, #tpu.memory_space<vmem>>, vector<1x144x128xbf16>
    %31 = vector.shape_cast %30 : vector<1x144x128xbf16> to vector<144x128xbf16>
    %cst_17 = arith.constant dense<0.000000e+00> : vector<16x128xf32>
    %32 = tpu.matmul %29, %31, %cst_17 {dimension_numbers = #tpu.dot_dimension_numbers<[1], [0], [0], [1], [0, 0, 1, 1], [], []>} : vector<16x144xbf16>, vector<144x128xbf16>, vector<16x128xf32> -> vector<16x128xf32>
    %33 = arith.addf %28, %32 : vector<16x128xf32>
    %c1 = arith.constant 1 : index
    %c0_18 = arith.constant 0 : index
    %34 = vector.load %arg8[%c1, %c0_18] : memref<18x144xbf16, #tpu.memory_space<vmem>>, vector<16x144xbf16>
    %c1_19 = arith.constant 1 : index
    %c0_20 = arith.constant 0 : index
    %c0_21 = arith.constant 0 : index
    %35 = vector.load %arg5[%c1_19, %c0_20, %c0_21] : memref<3x144x128xbf16, #tpu.memory_space<vmem>>, vector<1x144x128xbf16>
    %36 = vector.shape_cast %35 : vector<1x144x128xbf16> to vector<144x128xbf16>
    %cst_22 = arith.constant dense<0.000000e+00> : vector<16x128xf32>
    %37 = tpu.matmul %34, %36, %cst_22 {dimension_numbers = #tpu.dot_dimension_numbers<[1], [0], [0], [1], [0, 0, 1, 1], [], []>} : vector<16x144xbf16>, vector<144x128xbf16>, vector<16x128xf32> -> vector<16x128xf32>
    %38 = arith.addf %33, %37 : vector<16x128xf32>
    %c2 = arith.constant 2 : index
    %c0_23 = arith.constant 0 : index
    %39 = vector.load %arg8[%c2, %c0_23] : memref<18x144xbf16, #tpu.memory_space<vmem>>, vector<16x144xbf16>
    %c2_24 = arith.constant 2 : index
    %c0_25 = arith.constant 0 : index
    %c0_26 = arith.constant 0 : index
    %40 = vector.load %arg5[%c2_24, %c0_25, %c0_26] : memref<3x144x128xbf16, #tpu.memory_space<vmem>>, vector<1x144x128xbf16>
    %41 = vector.shape_cast %40 : vector<1x144x128xbf16> to vector<144x128xbf16>
    %cst_27 = arith.constant dense<0.000000e+00> : vector<16x128xf32>
    %42 = tpu.matmul %39, %41, %cst_27 {dimension_numbers = #tpu.dot_dimension_numbers<[1], [0], [0], [1], [0, 0, 1, 1], [], []>} : vector<16x144xbf16>, vector<144x128xbf16>, vector<16x128xf32> -> vector<16x128xf32>
    %43 = arith.addf %38, %42 : vector<16x128xf32>
    %c0_28 = arith.constant 0 : index
    %c0_29 = arith.constant 0 : index
    %44 = vector.load %arg6[%c0_28, %c0_29] : memref<1x128xf32, #tpu.memory_space<vmem>>, vector<1x128xf32>
    %45 = vector.broadcast %44 : vector<1x128xf32> to vector<16x128xf32>
    %46 = arith.addf %43, %45 : vector<16x128xf32>
    %cst_30 = arith.constant 0.000000e+00 : f32
    %47 = vector.broadcast %cst_30 : f32 to vector<16x128xf32>
    %48 = arith.maximumf %46, %47 : vector<16x128xf32>
    %49 = arith.truncf %48 : vector<16x128xf32> to vector<16x128xbf16>
    %c0_31 = arith.constant 0 : index
    %c0_32 = arith.constant 0 : index
    %c0_33 = arith.constant 0 : index
    %50 = vector.load %arg7[%c0_31, %c0_32, %c0_33] : memref<1x16x128xbf16, #tpu.memory_space<vmem>>, vector<1x16x128xbf16>
    %51 = vector.shape_cast %50 : vector<1x16x128xbf16> to vector<16x128xbf16>
    %52 = vector.shape_cast %49 : vector<16x128xbf16> to vector<1x16x128xbf16>
    tpu.vector_store %arg7[%c0_31, %c0_32, %c0_33], %52 {strides = array<i32>} : memref<1x16x128xbf16, #tpu.memory_space<vmem>>, vector<1x16x128xbf16>,
    return
  }
  func.func @transform_0(%arg0: i32, %arg1: i32) -> (i32, i32, i32) {
    %c0_i32 = arith.constant 0 : i32
    %c0_i32_0 = arith.constant 0 : i32
    %c0_i32_1 = arith.constant 0 : i32
    return %arg0, %c0_i32, %c0_i32_0 : i32, i32, i32
  }
  func.func @transform_1(%arg0: i32, %arg1: i32) -> (i32, i32) {
    %c0_i32 = arith.constant 0 : i32
    %c0_i32_0 = arith.constant 0 : i32
    %c0_i32_1 = arith.constant 0 : i32
    return %c0_i32, %c0_i32_0 : i32, i32
  }
  func.func @transform_2(%arg0: i32, %arg1: i32) -> (i32, i32) {
    %c0_i32 = arith.constant 0 : i32
    %c0_i32_0 = arith.constant 0 : i32
    %c0_i32_1 = arith.constant 0 : i32
    return %c0_i32, %c0_i32_0 : i32, i32
  }
  func.func @transform_3(%arg0: i32, %arg1: i32) -> (i32, i32, i32) {
    %c0_i32 = arith.constant 0 : i32
    %c0_i32_0 = arith.constant 0 : i32
    %c0_i32_1 = arith.constant 0 : i32
    %c0_i32_2 = arith.constant 0 : i32
    return %c0_i32, %c0_i32_0, %c0_i32_1 : i32, i32, i32
  }
  func.func @transform_4(%arg0: i32, %arg1: i32) -> (i32, i32) {
    %c0_i32 = arith.constant 0 : i32
    %c0_i32_0 = arith.constant 0 : i32
    %c0_i32_1 = arith.constant 0 : i32
    return %c0_i32, %c0_i32_0 : i32, i32
  }
  func.func @transform_5(%arg0: i32, %arg1: i32) -> (i32, i32, i32) {
    %c0_i32 = arith.constant 0 : i32
    %c0_i32_0 = arith.constant 0 : i32
    return %arg0, %arg1, %c0_i32 : i32, i32, i32
  }
}

</mosaic_0001>

<llo_original>
// kernel: tpu_custom_call.1
$region0: #{tpu_custom_call.1}
  #allocation0 [shape = 'u32[]', space=smem, size = 0x4, offset = 0x4, fixed_abs, tag = 'smem constant byte address 0x4 - core index']
  #allocation1 [shape = 'u32[144,128]{1,0:T(1,128)}', space=vmem, size = 0x12000, scoped, tag = 'internal scratch']
  #allocation2 [shape = 'bf16[18,144]{1,0:T(8,128)(2,1)}', space=vmem, size = 0x3000, scoped, tag = 'scratch operand']
  %s0 = inlined_call_operand.hbm [shape: bf16[2,18,240], index: 0, kind: input, shape index: {}]
  %s1 = inlined_call_operand.hbm [shape: bf16[240,144], index: 1, kind: input, shape index: {}]
  %s2 = inlined_call_operand.hbm [shape: f32[1,144], index: 2, kind: input, shape index: {}]
  %s3 = inlined_call_operand.hbm [shape: bf16[3,144,128], index: 3, kind: input, shape index: {}]
  %s4 = inlined_call_operand.hbm [shape: f32[1,128], index: 4, kind: input, shape index: {}]
  %s5 = inlined_call_operand.hbm [shape: bf16[2,16,128], index: 5, kind: output, shape index: {}]
  %s6 = sld [smem:[#allocation0]]
  $region73: #{tpu_custom_call.1} parent=0
    _
  %s8 = ssub.s32 1, %s6
  %s9 = scalar_select 0, %s8, %s6
  $region1: #{tpu_custom_call.1} parent=0
    #allocation3 [shape = 'u8[24576]{0}', space=vmem, size = 0x6000, scoped, tag = 'input window, operand 0']
    #allocation4 [shape = 's32[2]{0}', space=sflag, size = 0x8, scoped, tag = 'scoped memory for tpu_custom_call.1']
    #allocation5 [shape = 's32[2]{0}', space=sflag, size = 0x8, scoped, tag = 'scoped memory for tpu_custom_call.1']
    #allocation6 [shape = 'u8[122880]{0}', space=vmem, size = 0x1e000, scoped, tag = 'input window, operand 1, single buffered']
    #allocation7 [shape = 's32[1]{0}', space=sflag, size = 0x4, scoped, tag = 'scoped memory for tpu_custom_call.1']
    #allocation8 [shape = 'u8[1024]{0}', space=vmem, size = 0x400, scoped, tag = 'input window, operand 2, single buffered']
    #allocation9 [shape = 'u8[110592]{0}', space=vmem, size = 0x1b000, scoped, tag = 'input window, operand 3, single buffered']
    #allocation10 [shape = 's32[1]{0}', space=sflag, size = 0x4, scoped, tag = 'scoped memory for tpu_custom_call.1']
    #allocation11 [shape = 'u8[512]{0}', space=vmem, size = 0x400, scoped, tag = 'input window, operand 4, single buffered']
    #allocation12 [shape = 'u8[8192]{0}', space=vmem, size = 0x2000, scoped, tag = 'output window, operand 0']
    %10 = vsyncpa [#allocation4], 0
    %s11 = scalar_lea.sflag [#allocation4], 1
    %12 = vsyncpa %s11, 0
    %13 = vsyncpa [#allocation7], 0
    %14 = vsyncpa [#allocation10], 0
    %15 = vsyncpa [#allocation5], 0
    %s16 = scalar_lea.sflag [#allocation5], 1
    %17 = vsyncpa %s16, 0
    loop: start=0, step=1, limit=4
    $region2: #{tpu_custom_call.1} parent=1 // loop_pre_header
      _
    $region3: #{tpu_custom_call.1} parent=1 // loop_header
      %s19 = sphi 0, %s23
      %p20 = scmp.ge.s32.totalorder %s19, 4
      %s26 = sphi 0, %s38
      %s27 = sphi 0, %s34
      %s28 = sphi 0, %s26
      %s29 = sphi 0, %s27
      %s30 = sphi 0, %s28
      %s31 = sphi 0, %s29
      %s41 = sphi 0, %s43
      %s44 = sphi 0, %s41
      %s45 = sphi 0, %s44
      %s61 = sphi 0, %s45
      %s65 = sphi 0, %s65
      %s67 = sphi 0, %s65
      %s68 = sphi 0, %s67
      %s82 = sphi 0, %s68
      %s86 = sphi 0, %s86
      %s88 = sphi 0, %s86
      %s89 = sphi 0, %s88
      %s103 = sphi 0, %s89
      %s107 = sphi 0, %s107
      %s109 = sphi 0, %s107
      %s110 = sphi 0, %s109
      %s124 = sphi 0, %s110
      %s128 = sphi 0, %s128
      %s130 = sphi 0, %s128
      %s131 = sphi 0, %s130
      %s145 = sphi 0, %s131
      %s153 = sphi 0, %s155
      %s156 = sphi 0, %s153
      %s157 = sphi 0, %s156
      %s173 = sphi 0, %s157
    $region4: #{tpu_custom_call.1} parent=1 // loop_header_branch
      %22 = sbr.rel (%p20) target = $region8
    $region5: #{tpu_custom_call.1} parent=1 // loop_body
      %s24 = ssub.s32 %s19, 1
      %s25 = ssub.s32 %s19, 2
      %s32 = sadd.s32 1, %s27
      %p33 = scmp.ge.s32.totalorder %s32, 1
      %s34 = scalar_select %p33, 0, %s32
      %s35 = sadd.s32 1, %s26
      %s36 = scalar_select %p33, %s35, %s26
      %p37 = scmp.ge.s32.totalorder %s36, 2
      %s38 = scalar_select %p37, 0, %s36
      %s39 = ssub.s32 %s26, %s38
      %p40 = scmp.eq.s32.totalorder %s39, 0
      %s42 = sadd.s32 %s41, 1
      %s43 = scalar_select %p40, %s41, %s42
      %p46 = pneg %p40
      %p47 = scmp.eq.s32.totalorder %s19, 1
      %p48 = por %p46, %p47
      %p49 = scmp.ne.s32.totalorder %s41, %s44
      %p50 = scmp.eq.s32.totalorder %s19, 0
      %p51 = por %p49, %p50
      %p52 = scmp.ne.s32.totalorder %s41, %s44
      %p53 = scmp.eq.s32.totalorder %s24, 1
      %p54 = por %p52, %p53
      %p55 = scmp.ne.s32.totalorder %s44, %s45
      %p56 = scmp.eq.s32.totalorder %s24, 0
      %p57 = por %p55, %p56
      %p58 = scmp.ne.s32.totalorder %s44, %s45
      %p59 = scmp.eq.s32.totalorder %s25, 1
      %p60 = por %p58, %p59
      %p62 = scmp.ne.s32.totalorder %s45, %s61
      %p63 = scmp.eq.s32.totalorder %s25, 0
      %p64 = por %p62, %p63
      %s66 = sadd.s32 %s65, 1
      %p69 = scmp.eq.s32.totalorder %s19, 1
      %p70 = scmp.ne.s32.totalorder %s65, %s67
      %p71 = scmp.eq.s32.totalorder %s19, 0
      %p72 = por %p70, %p71
      %p73 = scmp.ne.s32.totalorder %s65, %s67
      %p74 = scmp.eq.s32.totalorder %s24, 1
      %p75 = por %p73, %p74
      %p76 = scmp.ne.s32.totalorder %s67, %s68
      %p77 = scmp.eq.s32.totalorder %s24, 0
      %p78 = por %p76, %p77
      %p79 = scmp.ne.s32.totalorder %s67, %s68
      %p80 = scmp.eq.s32.totalorder %s25, 1
      %p81 = por %p79, %p80
      %p83 = scmp.ne.s32.totalorder %s68, %s82
      %p84 = scmp.eq.s32.totalorder %s25, 0
      %p85 = por %p83, %p84
      %s87 = sadd.s32 %s86, 1
      %p90 = scmp.eq.s32.totalorder %s19, 1
      %p91 = scmp.ne.s32.totalorder %s86, %s88
      %p92 = scmp.eq.s32.totalorder %s19, 0
      %p93 = por %p91, %p92
      %p94 = scmp.ne.s32.totalorder %s86, %s88
      %p95 = scmp.eq.s32.totalorder %s24, 1
      %p96 = por %p94, %p95
      %p97 = scmp.ne.s32.totalorder %s88, %s89
      %p98 = scmp.eq.s32.totalorder %s24, 0
      %p99 = por %p97, %p98
      %p100 = scmp.ne.s32.totalorder %s88, %s89
      %p101 = scmp.eq.s32.totalorder %s25, 1
      %p102 = por %p100, %p101
      %p104 = scmp.ne.s32.totalorder %s89, %s103
      %p105 = scmp.eq.s32.totalorder %s25, 0
      %p106 = por %p104, %p105
      %s108 = sadd.s32 %s107, 1
      %p111 = scmp.eq.s32.totalorder %s19, 1
      %p112 = scmp.ne.s32.totalorder %s107, %s109
      %p113 = scmp.eq.s32.totalorder %s19, 0
      %p114 = por %p112, %p113
      %p115 = scmp.ne.s32.totalorder %s107, %s109
      %p116 = scmp.eq.s32.totalorder %s24, 1
      %p117 = por %p115, %p116
      %p118 = scmp.ne.s32.totalorder %s109, %s110
      %p119 = scmp.eq.s32.totalorder %s24, 0
      %p120 = por %p118, %p119
      %p121 = scmp.ne.s32.totalorder %s109, %s110
      %p122 = scmp.eq.s32.totalorder %s25, 1
      %p123 = por %p121, %p122
      %p125 = scmp.ne.s32.totalorder %s110, %s124
      %p126 = scmp.eq.s32.totalorder %s25, 0
      %p127 = por %p125, %p126
      %s129 = sadd.s32 %s128, 1
      %p132 = scmp.eq.s32.totalorder %s19, 1
      %p133 = scmp.ne.s32.totalorder %s128, %s130
      %p134 = scmp.eq.s32.totalorder %s19, 0
      %p135 = por %p133, %p134
      %p136 = scmp.ne.s32.totalorder %s128, %s130
      %p137 = scmp.eq.s32.totalorder %s24, 1
      %p138 = por %p136, %p137
      %p139 = scmp.ne.s32.totalorder %s130, %s131
      %p140 = scmp.eq.s32.totalorder %s24, 0
      %p141 = por %p139, %p140
      %p142 = scmp.ne.s32.totalorder %s130, %s131
      %p143 = scmp.eq.s32.totalorder %s25, 1
      %p144 = por %p142, %p143
      %p146 = scmp.ne.s32.totalorder %s131, %s145
      %p147 = scmp.eq.s32.totalorder %s25, 0
      %p148 = por %p146, %p147
      %s149 = ssub.s32 %s26, %s38
      %s150 = ssub.s32 %s27, %s34
      %s151 = sor.u32 %s149, %s150
      %p152 = scmp.eq.s32.totalorder %s151, 0
      %s154 = sadd.s32 %s153, 1
      %s155 = scalar_select %p152, %s153, %s154
      %p158 = pneg %p152
      %p159 = scmp.eq.s32.totalorder %s19, 1
      %p160 = por %p158, %p159
      %p161 = scmp.ne.s32.totalorder %s153, %s156
      %p162 = scmp.eq.s32.totalorder %s19, 0
      %p163 = por %p161, %p162
      %p164 = scmp.ne.s32.totalorder %s153, %s156
      %p165 = scmp.eq.s32.totalorder %s24, 1
      %p166 = por %p164, %p165
      %p167 = scmp.ne.s32.totalorder %s156, %s157
      %p168 = scmp.eq.s32.totalorder %s24, 0
      %p169 = por %p167, %p168
      %p170 = scmp.ne.s32.totalorder %s156, %s157
      %p171 = scmp.eq.s32.totalorder %s25, 1
      %p172 = por %p170, %p171
      %p174 = scmp.ne.s32.totalorder %s157, %s173
      %p175 = scmp.eq.s32.totalorder %s25, 0
      %p176 = por %p174, %p175
      %p177 = scmp.le.s32.totalorder 1, %s19
      %p178 = scmp.lt.s32.totalorder %s19, 3
      %p179 = pnand %p177, %p178
      %p180 = pneg %p179
      // Predicated region
      $region9: #{tpu_custom_call.1} parent=5 // pred_check
        _
      $region10: #{tpu_custom_call.1} parent=5 // pred_check_branch
        %182 = sbr.rel (%p179) target = $region12
      $region11: #{tpu_custom_call.1} parent=5 // pred_region
        %s183 = ssub.s32 %s19, 1
        // Predicated region
        $region13: #{tpu_custom_call.1} parent=11 // pred_check
          %p184 = pneg %p78
        $region14: #{tpu_custom_call.1} parent=11 // pred_check_branch
          %186 = sbr.rel (%p184) target = $region16
        $region15: #{tpu_custom_call.1} parent=11 // pred_region
          %s188 = ssub.s32 3840, 3840
          %189 = vsyncadd [#allocation7], %s188
          %s190 = sshll.u32 [#allocation6], 4
          %s191 = int_to_ptr.vmem [resolvable:$true] %s190
          %196 = dma.hbm_to_vmem [thread:$0]  %s1, 3840, %s191, [#allocation7], 128, 128, 8
        $region16: #{tpu_custom_call.1} parent=11 // pred_fallthru
          _
        // Predicated region
        $region17: #{tpu_custom_call.1} parent=11 // pred_check
          %p197 = pneg %p99
        $region18: #{tpu_custom_call.1} parent=11 // pred_check_branch
          %199 = sbr.rel (%p197) target = $region20
        $region19: #{tpu_custom_call.1} parent=11 // pred_region
          %s201 = ssub.s32 32, 32
          %202 = vsyncadd [#allocation7], %s201
          %s204 = sshll.u32 [#allocation8], 4
          %s205 = int_to_ptr.vmem [resolvable:$true] %s204
          %207 = dma.hbm_to_vmem [thread:$0]  %s2, 32, %s205, [#allocation7]
        $region20: #{tpu_custom_call.1} parent=11 // pred_fallthru
          _
        // Predicated region
        $region21: #{tpu_custom_call.1} parent=11 // pred_check
          %p208 = pneg %p120
        $region22: #{tpu_custom_call.1} parent=11 // pred_check_branch
          %210 = sbr.rel (%p208) target = $region24
        $region23: #{tpu_custom_call.1} parent=11 // pred_region
          %s212 = ssub.s32 3456, 3456
          %213 = vsyncadd [#allocation10], %s212
          %s214 = sshll.u32 [#allocation9], 4
          %s215 = int_to_ptr.vmem [resolvable:$true] %s214
          %220 = dma.hbm_to_vmem [thread:$0]  %s3, 3456, %s215, [#allocation10], 64, 64, 4
        $region24: #{tpu_custom_call.1} parent=11 // pred_fallthru
          _
        // Predicated region
        $region25: #{tpu_custom_call.1} parent=11 // pred_check
          %p221 = pneg %p141
        $region26: #{tpu_custom_call.1} parent=11 // pred_check_branch
          %223 = sbr.rel (%p221) target = $region28
        $region27: #{tpu_custom_call.1} parent=11 // pred_region
          %s225 = ssub.s32 16, 16
          %226 = vsyncadd [#allocation10], %s225
          %s228 = sshll.u32 [#allocation11], 4
          %s229 = int_to_ptr.vmem [resolvable:$true] %s228
          %231 = dma.hbm_to_vmem [thread:$0]  %s4, 16, %s229, [#allocation10]
        $region28: #{tpu_custom_call.1} parent=11 // pred_fallthru
          _
      $region12: #{tpu_custom_call.1} parent=5 // pred_fallthru
        _
      %p232 = scmp.lt.s32.totalorder %s19, 2
      // Predicated region
      $region29: #{tpu_custom_call.1} parent=5 // pred_check
        %p233 = pneg %p232
      $region30: #{tpu_custom_call.1} parent=5 // pred_check_branch
        %235 = sbr.rel (%p233) target = $region32
      $region31: #{tpu_custom_call.1} parent=5 // pred_region
        // Predicated region
        $region33: #{tpu_custom_call.1} parent=31 // pred_check
          %p236 = pneg %p51
        $region34: #{tpu_custom_call.1} parent=31 // pred_check_branch
          %238 = sbr.rel (%p236) target = $region36
        $region35: #{tpu_custom_call.1} parent=31 // pred_region
          %s239 = sand.u32 %s41, 1
          %s240 = scalar_lea.sflag [#allocation4], %s239
          %s241 = sand.u32 %s41, 1
          %s242 = smul.addr %s241, 24
          %s243 = scalar_lea.vmem [#allocation3], %s242
          %s245 = ssub.s32 384, 384
          %246 = vsyncadd %s240, %s245
          %s247 = smul.addr %s26, 6
          %s248 = smul.addr %s247, 64
          %s249 = scalar_lea.hbm %s0, %s248
          %s250 = sshll.u32 %s243, 4
          %s251 = int_to_ptr.vmem [resolvable:$true] %s250
          %256 = dma.hbm_to_vmem [thread:$0]  %s249, 384, %s251, %s240, 128, 128, 8
        $region36: #{tpu_custom_call.1} parent=31 // pred_fallthru
          _
      $region32: #{tpu_custom_call.1} parent=5 // pred_fallthru
        _
      %p257 = scmp.le.s32.totalorder 1, %s19
      %p258 = scmp.lt.s32.totalorder %s19, 3
      %p259 = pnand %p257, %p258
      %p260 = pneg %p259
      // Predicated region
      $region37: #{tpu_custom_call.1} parent=5 // pred_check
        _
      $region38: #{tpu_custom_call.1} parent=5 // pred_check_branch
        %262 = sbr.rel (%p259) target = $region40
      $region39: #{tpu_custom_call.1} parent=5 // pred_region
        %s263 = ssub.s32 %s19, 1
        %s264 = sand.u32 %s44, 1
        %s265 = scalar_lea.sflag [#allocation4], %s264
        %s266 = sand.u32 %s44, 1
        %s267 = smul.addr %s266, 24
        %s268 = scalar_lea.vmem [#allocation3], %s267
        // Predicated region
        $region41: #{tpu_custom_call.1} parent=39 // pred_check
          %p269 = pneg %p57
        $region42: #{tpu_custom_call.1} parent=39 // pred_check_branch
          %271 = sbr.rel (%p269) target = $region44
        $region43: #{tpu_custom_call.1} parent=39 // pred_region
          %272 = dma.done %s265, 384
        $region44: #{tpu_custom_call.1} parent=39 // pred_fallthru
          _
        // Predicated region
        $region45: #{tpu_custom_call.1} parent=39 // pred_check
          %p273 = pneg %p78
        $region46: #{tpu_custom_call.1} parent=39 // pred_check_branch
          %275 = sbr.rel (%p273) target = $region48
        $region47: #{tpu_custom_call.1} parent=39 // pred_region
          %276 = dma.done [#allocation7], 3840
        $region48: #{tpu_custom_call.1} parent=39 // pred_fallthru
          _
        // Predicated region
        $region49: #{tpu_custom_call.1} parent=39 // pred_check
          %p277 = pneg %p99
        $region50: #{tpu_custom_call.1} parent=39 // pred_check_branch
          %279 = sbr.rel (%p277) target = $region52
        $region51: #{tpu_custom_call.1} parent=39 // pred_region
          %280 = dma.done [#allocation7], 32
        $region52: #{tpu_custom_call.1} parent=39 // pred_fallthru
          _
        // Predicated region
        $region53: #{tpu_custom_call.1} parent=39 // pred_check
          %p281 = pneg %p120
        $region54: #{tpu_custom_call.1} parent=39 // pred_check_branch
          %283 = sbr.rel (%p281) target = $region56
        $region55: #{tpu_custom_call.1} parent=39 // pred_region
          %284 = dma.done [#allocation10], 3456
        $region56: #{tpu_custom_call.1} parent=39 // pred_fallthru
          _
        // Predicated region
        $region57: #{tpu_custom_call.1} parent=39 // pred_check
          %p285 = pneg %p141
        $region58: #{tpu_custom_call.1} parent=39 // pred_check_branch
          %287 = sbr.rel (%p285) target = $region60
        $region59: #{tpu_custom_call.1} parent=39 // pred_region
          %288 = dma.done [#allocation10], 16
        $region60: #{tpu_custom_call.1} parent=39 // pred_fallthru
          _
        %s289 = sand.u32 %s44, 1
        %s290 = scalar_lea.sflag [#allocation4], %s289
        %s291 = sand.u32 %s44, 1
        %s292 = smul.addr %s291, 24
        %s293 = scalar_lea.vmem [#allocation3], %s292
        %p294 = pneg %p57
        %p295 = pneg %p54
        %p296 = pneg %p78
        %p297 = pneg %p75
        %p298 = pneg %p99
        %p299 = pneg %p96
        %p300 = pneg %p120
        %p301 = pneg %p117
        %p302 = pneg %p141
        %p303 = pneg %p138
        %p304 = pneg %p169
        %p305 = pneg %p166
        %s306 = sand.u32 %s156, 1
        %s307 = scalar_lea.sflag [#allocation5], %s306
        %s308 = sand.u32 %s156, 1
        %s309 = smul.addr %s308, 8
        %s310 = scalar_lea.vmem [#allocation12], %s309
        %s311 = smul.u32 2, %s29
        %s313 = smul.u32 %s29, 16
        %s314 = sshra.s32 %s313, 3
        %s315 = sand.u32 %s313, 7
        %s316 = smul.u32 %s314, 2
        %s317 = smul.addr %s316, 4
        %s318 = scalar_lea.vmem %s268, %s317 [#allocation3]
        %v319 = vld [vmem:[%s318] sm:$0xff]
        %v320 = vld [vmem:[%s318 + $0x8] sm:$0xff]
        %v321 = vld [vmem:[%s318 + $0x10] sm:$0x11]
        %v322 = vld [vmem:[#allocation6] sm:$0xff]
        %v323 = vld [vmem:[#allocation6 + $0x8] sm:$0xff]
        %v324 = vld [vmem:[#allocation6 + $0x10] sm:$0xff]
        %v325 = vld [vmem:[#allocation6 + $0x18] sm:$0xff]
        %v326 = vld [vmem:[#allocation6 + $0x20] sm:$0xff]
        %v327 = vld [vmem:[#allocation6 + $0x28] sm:$0xff]
        %v328 = vld [vmem:[#allocation6 + $0x30] sm:$0xff]
        %v329 = vld [vmem:[#allocation6 + $0x38] sm:$0xff]
        %v330 = vld [vmem:[#allocation6 + $0x40] sm:$0xff]
        %v331 = vld [vmem:[#allocation6 + $0x48] sm:$0xff]
        %v332 = vld [vmem:[#allocation6 + $0x50] sm:$0xff]
        %v333 = vld [vmem:[#allocation6 + $0x58] sm:$0xff]
        %v334 = vld [vmem:[#allocation6 + $0x60] sm:$0xff]
        %v335 = vld [vmem:[#allocation6 + $0x68] sm:$0xff]
        %v336 = vld [vmem:[#allocation6 + $0x70] sm:$0xff]
        %v337 = vld [vmem:[#allocation6 + $0x78] sm:$0xff]
        %v338 = vld [vmem:[#allocation6 + $0x80] sm:$0xff]
        %v339 = vld [vmem:[#allocation6 + $0x88] sm:$0xff]
        %v340 = vld [vmem:[#allocation6 + $0x90] sm:$0xff]
        %v341 = vld [vmem:[#allocation6 + $0x98] sm:$0xff]
        %v342 = vld [vmem:[#allocation6 + $0xa0] sm:$0xff]
        %v343 = vld [vmem:[#allocation6 + $0xa8] sm:$0xff]
        %v344 = vld [vmem:[#allocation6 + $0xb0] sm:$0xff]
        %v345 = vld [vmem:[#allocation6 + $0xb8] sm:$0xff]
        %v346 = vld [vmem:[#allocation6 + $0xc0] sm:$0xff]
        %v347 = vld [vmem:[#allocation6 + $0xc8] sm:$0xff]
        %v348 = vld [vmem:[#allocation6 + $0xd0] sm:$0xff]
        %v349 = vld [vmem:[#allocation6 + $0xd8] sm:$0xff]
        %v350 = vld [vmem:[#allocation6 + $0xe0] sm:$0xff]
        %v351 = vld [vmem:[#allocation6 + $0xe8] sm:$0xff]
        %v352 = vld [vmem:[#allocation8] sm:$0x3]
        %v354 = vlaneseq
        %v355 = vshrl.u32 %v354, 7
        %v356 = vsub.s32 0, %v355
        %v357 = vrot.slane %v352, %v356
        %v358 = vlaneseq
        %v359 = vshrl.u32 %v358, 7
        %v360 = vsub.s32 1, %v359
        %v361 = vrot.slane %v352, %v360
        %v367 = vunpack.c.l.b16 %v319
        %v368 = vunpack.c.h.b16 %v319
        %v369 = vunpack.c.l.b16 %v320
        %v370 = vunpack.c.h.b16 %v320
        %v371 = vunpack.c.l.b16 %v321
        %v372 = vunpack.c.h.b16 %v321
        %v373 = vpack.c.b16 %v369, %v367
        %v374 = vpack.c.b16 %v370, %v368
        %v375 = vpack.c.b16 %v371, %v371
        %v376 = vpack.c.b16 %v372, %v372
        %v409 = vunpack.c.l.b16 %v322
        %v410 = vunpack.c.h.b16 %v322
        %v411 = vunpack.c.l.b16 %v323
        %v412 = vunpack.c.h.b16 %v323
        %v413 = vunpack.c.l.b16 %v324
        %v414 = vunpack.c.h.b16 %v324
        %v415 = vunpack.c.l.b16 %v325
        %v416 = vunpack.c.h.b16 %v325
        %v417 = vunpack.c.l.b16 %v326
        %v418 = vunpack.c.h.b16 %v326
        %v419 = vunpack.c.l.b16 %v327
        %v420 = vunpack.c.h.b16 %v327
        %v421 = vunpack.c.l.b16 %v328
        %v422 = vunpack.c.h.b16 %v328
        %v423 = vunpack.c.l.b16 %v329
        %v424 = vunpack.c.h.b16 %v329
        %v425 = vunpack.c.l.b16 %v330
        %v426 = vunpack.c.h.b16 %v330
        %v427 = vunpack.c.l.b16 %v331
        %v428 = vunpack.c.h.b16 %v331
        %v429 = vunpack.c.l.b16 %v332
        %v430 = vunpack.c.h.b16 %v332
        %v431 = vunpack.c.l.b16 %v333
        %v432 = vunpack.c.h.b16 %v333
        %v433 = vunpack.c.l.b16 %v334
        %v434 = vunpack.c.h.b16 %v334
        %v435 = vunpack.c.l.b16 %v335
        %v436 = vunpack.c.h.b16 %v335
        %v437 = vunpack.c.l.b16 %v336
        %v438 = vunpack.c.h.b16 %v336
        %v439 = vunpack.c.l.b16 %v337
        %v440 = vunpack.c.h.b16 %v337
        %v441 = vunpack.c.l.b16 %v338
        %v442 = vunpack.c.h.b16 %v338
        %v443 = vunpack.c.l.b16 %v339
        %v444 = vunpack.c.h.b16 %v339
        %v445 = vunpack.c.l.b16 %v340
        %v446 = vunpack.c.h.b16 %v340
        %v447 = vunpack.c.l.b16 %v341
        %v448 = vunpack.c.h.b16 %v341
        %v449 = vunpack.c.l.b16 %v342
        %v450 = vunpack.c.h.b16 %v342
        %v451 = vunpack.c.l.b16 %v343
        %v452 = vunpack.c.h.b16 %v343
        %v453 = vunpack.c.l.b16 %v344
        %v454 = vunpack.c.h.b16 %v344
        %v455 = vunpack.c.l.b16 %v345
        %v456 = vunpack.c.h.b16 %v345
        %v457 = vunpack.c.l.b16 %v346
        %v458 = vunpack.c.h.b16 %v346
        %v459 = vunpack.c.l.b16 %v347
        %v460 = vunpack.c.h.b16 %v347
        %v461 = vunpack.c.l.b16 %v348
        %v462 = vunpack.c.h.b16 %v348
        %v463 = vunpack.c.l.b16 %v349
        %v464 = vunpack.c.h.b16 %v349
        %v465 = vunpack.c.l.b16 %v350
        %v466 = vunpack.c.h.b16 %v350
        %v467 = vunpack.c.l.b16 %v351
        %v468 = vunpack.c.h.b16 %v351
        %v469 = vpack.c.b16 %v411, %v409
        %v470 = vpack.c.b16 %v412, %v410
        %v471 = vpack.c.b16 %v415, %v413
        %v472 = vpack.c.b16 %v416, %v414
        %v473 = vpack.c.b16 %v419, %v417
        %v474 = vpack.c.b16 %v420, %v418
        %v475 = vpack.c.b16 %v423, %v421
        %v476 = vpack.c.b16 %v424, %v422
        %v477 = vpack.c.b16 %v427, %v425
        %v478 = vpack.c.b16 %v428, %v426
        %v479 = vpack.c.b16 %v431, %v429
        %v480 = vpack.c.b16 %v432, %v430
        %v481 = vpack.c.b16 %v435, %v433
        %v482 = vpack.c.b16 %v436, %v434
        %v483 = vpack.c.b16 %v439, %v437
        %v484 = vpack.c.b16 %v440, %v438
        %v485 = vpack.c.b16 %v443, %v441
        %v486 = vpack.c.b16 %v444, %v442
        %v487 = vpack.c.b16 %v447, %v445
        %v488 = vpack.c.b16 %v448, %v446
        %v489 = vpack.c.b16 %v451, %v449
        %v490 = vpack.c.b16 %v452, %v450
        %v491 = vpack.c.b16 %v455, %v453
        %v492 = vpack.c.b16 %v456, %v454
        %v493 = vpack.c.b16 %v459, %v457
        %v494 = vpack.c.b16 %v460, %v458
        %v495 = vpack.c.b16 %v463, %v461
        %v496 = vpack.c.b16 %v464, %v462
        %v497 = vpack.c.b16 %v467, %v465
        %v498 = vpack.c.b16 %v468, %v466
        %vm529 = vcmask 916480
        %v531 = vsel %vm529, %v374, 0
        %v534 = vsel %vm529, %v376, 0
        %536 = vmatprep.subr.bf16.mxu0 %v470
        %537 = vmatpush1.bf16.msra.mxu0 %v469
        %538 = vmatprep.subr.bf16.mxu0 %v472
        %539 = vmatpush1.bf16.msra.mxu0 %v471
        %540 = vmatprep.subr.bf16.mxu0 %v474
        %541 = vmatpush1.bf16.msra.mxu0 %v473
        %542 = vmatprep.subr.bf16.mxu0 %v476
        %543 = vmatpush1.bf16.msra.mxu0 %v475
        %544 = vmatprep.subr.bf16.mxu0 %v478
        %545 = vmatpush1.bf16.msra.mxu0 %v477
        %546 = vmatprep.subr.bf16.mxu0 %v480
        %547 = vmatpush1.bf16.msra.mxu0 %v479
        %548 = vmatprep.subr.bf16.mxu0 %v482
        %549 = vmatpush1.bf16.msra.mxu0 %v481
        %550 = vmatprep.subr.bf16.mxu0 %v484
        %551 = vmatpush1.bf16.msra.mxu0 %v483
        %552 = vmatprep.subr.bf16.mxu0 %v486
        %553 = vmatpush1.bf16.msra.mxu0 %v485
        %554 = vmatprep.subr.bf16.mxu0 %v488
        %555 = vmatpush1.bf16.msra.mxu0 %v487
        %556 = vmatprep.subr.bf16.mxu0 %v490
        %557 = vmatpush1.bf16.msra.mxu0 %v489
        %558 = vmatprep.subr.bf16.mxu0 %v492
        %559 = vmatpush1.bf16.msra.mxu0 %v491
        %560 = vmatprep.subr.bf16.mxu0 %v494
        %561 = vmatpush1.bf16.msra.mxu0 %v493
        %562 = vmatprep.subr.bf16.mxu0 %v496
        %563 = vmatpush1.bf16.msra.mxu0 %v495
        %564 = vmatprep.subr.bf16.mxu0 %v498
        %565 = vmatpush1.bf16.msra.mxu0 %v497
        %566 = vmatprep.subr.bf16.mxu0 0
        %567 = vmatpush1.bf16.msra.mxu0 0
        %568 = vmatprep.mubr.bf16.mxu0 %v531
        %569 = vmatmul.mubr.bf16.gmra.mrb[0].mxu0 %v373
        %v570 = vpop.f32.mrb[0].mxu0
        %v571 = vadd.f32 %v357, %v570
        %v572 = vpop.f32.mrb[0].mxu0
        %v573 = vadd.f32 %v361, %v572
        %v574 = vpop.f32.mrb[0].mxu0
        %v575 = vadd.f32 %v357, %v574
        %v576 = vpop.f32.mrb[0].mxu0
        %v577 = vadd.f32 %v361, %v576
        %578 = vmatprep.mubr.bf16.mxu0 %v534
        %579 = vmatmul.mubr.bf16.gmra.mrb[0].mxu0 %v375
        %v580 = vpop.f32.mrb[0].mxu0
        %v581 = vadd.f32 %v357, %v580
        %v582 = vpop.f32.mrb[0].mxu0
        %v583 = vadd.f32 %v361, %v582
        %v584 = vpop.f32.mrb[0].mxu0
        %v585 = vpop.f32.mrb[0].mxu0
        %586 = vdwg.mxu0
        %v587 = vmax.f32 %v571, 0.0
        %v588 = vmax.f32 %v573, 0.0
        %v589 = vmax.f32 %v575, 0.0
        %v590 = vmax.f32 %v577, 0.0
        %v591 = vmax.f32 %v581, 0.0
        %v592 = vmax.f32 %v583, 0.0
        %v593 = vlaneseq
        %v594 = vshrl.u32 %v593, 7
        %v595 = vadd.s32 %v594, 8
        %v596 = vadd.s32 %v594, 16
        %vm597 = vcmp.ge.s32.totalorder %v594, 1
        %vm598 = vcmp.ge.s32.totalorder %v595, 1
        %vm599 = vcmp.ge.s32.totalorder %v596, 1
        %p600 = scmp.gt.s32.totalorder %s29, 0
        %s601 = scalar_select %p600, 1, 0
        %v602 = vstv %s601
        %vm603 = vcmp.eq.s32.totalorder %v602, 1
        %vm604 = vmor %vm597, %vm603
        %vm605 = vmor %vm598, %vm603
        %vm606 = vmor %vm599, %vm603
        %vm607 = vcmp.le.s32.totalorder %v594, 16
        %vm608 = vcmp.le.s32.totalorder %v595, 16
        %vm609 = vcmp.le.s32.totalorder %v596, 16
        %p610 = scmp.lt.s32.totalorder %s29, 0
        %s611 = scalar_select %p610, 1, 0
        %v612 = vstv %s611
        %vm613 = vcmp.eq.s32.totalorder %v612, 1
        %vm614 = vmor %vm607, %vm613
        %vm615 = vmor %vm608, %vm613
        %vm616 = vmor %vm609, %vm613
        %vm617 = vmand %vm604, %vm614
        %vm618 = vmand %vm605, %vm615
        %vm619 = vmand %vm606, %vm616
        %v620 = vsel %vm617, %v587, 0.0
        %v621 = vsel %vm617, %v588, 0.0
        %v622 = vsel %vm618, %v589, 0.0
        %v623 = vsel %vm618, %v590, 0.0
        %v624 = vsel %vm619, %v591, 0.0
        %v625 = vsel %vm619, %v592, 0.0
        %v626 = vpack.c.bf16 %v622, %v620
        %v627 = vpack.c.bf16 %v623, %v621
        %v628 = vpack.c.bf16 %v624, %v624
        %v629 = vpack.c.bf16 %v625, %v625
        %v634 = vunpack.c.l.b16 %v626
        %v635 = vunpack.c.l.b16 %v627
        %v636 = vunpack.c.h.b16 %v626
        %v637 = vunpack.c.h.b16 %v627
        %v638 = vunpack.c.l.b16 %v628
        %v639 = vunpack.c.l.b16 %v629
        %v640 = vpack.c.b16 %v635, %v634
        %v641 = vpack.c.b16 %v637, %v636
        %v642 = vpack.c.b16 %v639, %v638
        %vm646 = vcmask 1043456
        %vm647 = vcmask 130052
        %vm648 = vmor %vm647, %vm646
        %649 = vst.msk [vmem:[#allocation2] sm:$0xff] %vm648, %v640
        %650 = vst.msk [vmem:[#allocation2 + $0x8] sm:$0xff] %vm648, %v641
        %vm651 = vcmask 1040384
        %vm652 = vcmask 126980
        %vm653 = vmor %vm652, %vm651
        %654 = vst.msk [vmem:[#allocation2 + $0x10] sm:$0x11] %vm653, %v642
        %v655 = vld [vmem:[#allocation2] sm:$0xff]
        %v656 = vld [vmem:[#allocation2 + $0x8] sm:$0xff]
        %v657 = vld [vmem:[#allocation9] sm:$0xf]
        %v658 = vld [vmem:[#allocation9 + $0x4] sm:$0xf]
        %v659 = vld [vmem:[#allocation9 + $0x8] sm:$0xf]
        %v660 = vld [vmem:[#allocation9 + $0xc] sm:$0xf]
        %v661 = vld [vmem:[#allocation9 + $0x10] sm:$0xf]
        %v662 = vld [vmem:[#allocation9 + $0x14] sm:$0xf]
        %v663 = vld [vmem:[#allocation9 + $0x18] sm:$0xf]
        %v664 = vld [vmem:[#allocation9 + $0x1c] sm:$0xf]
        %v665 = vld [vmem:[#allocation9 + $0x20] sm:$0xf]
        %v666 = vld [vmem:[#allocation9 + $0x24] sm:$0xf]
        %v667 = vld [vmem:[#allocation9 + $0x28] sm:$0xf]
        %v668 = vld [vmem:[#allocation9 + $0x2c] sm:$0xf]
        %v669 = vld [vmem:[#allocation9 + $0x30] sm:$0xf]
        %v670 = vld [vmem:[#allocation9 + $0x34] sm:$0xf]
        %v671 = vld [vmem:[#allocation9 + $0x38] sm:$0xf]
        %v672 = vld [vmem:[#allocation9 + $0x3c] sm:$0xf]
        %v673 = vld [vmem:[#allocation9 + $0x40] sm:$0xf]
        %v674 = vld [vmem:[#allocation9 + $0x44] sm:$0xf]
        %v675 = vld [vmem:[#allocation2 + $0x10] sm:$0x11]
        %s676 = scalar_lea.vmem [#allocation9], 72
        %v677 = vld [vmem:[%s676] sm:$0xf]
        %v678 = vld [vmem:[%s676 + $0x4] sm:$0xf]
        %v679 = vld [vmem:[%s676 + $0x8] sm:$0xf]
        %v680 = vld [vmem:[%s676 + $0xc] sm:$0xf]
        %v681 = vld [vmem:[%s676 + $0x10] sm:$0xf]
        %v682 = vld [vmem:[%s676 + $0x14] sm:$0xf]
        %v683 = vld [vmem:[%s676 + $0x18] sm:$0xf]
        %v684 = vld [vmem:[%s676 + $0x1c] sm:$0xf]
        %v685 = vld [vmem:[%s676 + $0x20] sm:$0xf]
        %v686 = vld [vmem:[%s676 + $0x24] sm:$0xf]
        %v687 = vld [vmem:[%s676 + $0x28] sm:$0xf]
        %v688 = vld [vmem:[%s676 + $0x2c] sm:$0xf]
        %v689 = vld [vmem:[%s676 + $0x30] sm:$0xf]
        %v690 = vld [vmem:[%s676 + $0x34] sm:$0xf]
        %v691 = vld [vmem:[%s676 + $0x38] sm:$0xf]
        %v692 = vld [vmem:[%s676 + $0x3c] sm:$0xf]
        %v693 = vld [vmem:[%s676 + $0x40] sm:$0xf]
        %v694 = vld [vmem:[%s676 + $0x44] sm:$0xf]
        %v698 = vunpack.c.l.b16 %v655
        %v699 = vunpack.c.h.b16 %v655
        %v700 = vunpack.c.l.b16 %v656
        %v701 = vunpack.c.h.b16 %v656
        %v702 = vunpack.c.l.b16 %v675
        %v703 = vunpack.c.h.b16 %v675
        %v704 = vpack.c.b16 %v700, %v698
        %v705 = vpack.c.b16 %v701, %v699
        %v706 = vpack.c.b16 %v702, %v702
        %v707 = vpack.c.b16 %v703, %v703
        %vm708 = vsmask.f32 7424
        %v710 = vshrl.u32 %v704, 16
        %v712 = vshll.u32 %v704, 16
        %v714 = vrot.slane %v712, 1
        %v715 = vor.u32 %v710, %v714
        %v717 = vshll.u32 %v706, 16
        %v719 = vrot.slane %v717, 1
        %v720 = vsel %vm708, %v715, %v719
        %v722 = vshrl.u32 %v705, 16
        %v724 = vshll.u32 %v705, 16
        %v726 = vrot.slane %v724, 1
        %v727 = vor.u32 %v722, %v726
        %v729 = vshll.u32 %v707, 16
        %v731 = vrot.slane %v729, 1
        %v732 = vsel %vm708, %v727, %v731
        %v752 = vunpack.c.l.b16 %v677
        %v753 = vunpack.c.l.b16 %v678
        %v754 = vunpack.c.l.b16 %v679
        %v755 = vunpack.c.l.b16 %v680
        %v756 = vunpack.c.l.b16 %v681
        %v757 = vunpack.c.l.b16 %v682
        %v758 = vunpack.c.l.b16 %v683
        %v759 = vunpack.c.l.b16 %v684
        %v760 = vunpack.c.l.b16 %v685
        %v761 = vunpack.c.l.b16 %v686
        %v762 = vunpack.c.l.b16 %v687
        %v763 = vunpack.c.l.b16 %v688
        %v764 = vunpack.c.l.b16 %v689
        %v765 = vunpack.c.l.b16 %v690
        %v766 = vunpack.c.l.b16 %v691
        %v767 = vunpack.c.l.b16 %v692
        %v768 = vunpack.c.l.b16 %v693
        %v769 = vunpack.c.l.b16 %v694
        %v770 = vpack.c.b16 %v753, %v752
        %v771 = vpack.c.b16 %v755, %v754
        %v772 = vpack.c.b16 %v757, %v756
        %v773 = vpack.c.b16 %v759, %v758
        %v774 = vpack.c.b16 %v761, %v760
        %v775 = vpack.c.b16 %v763, %v762
        %v776 = vpack.c.b16 %v765, %v764
        %v777 = vpack.c.b16 %v767, %v766
        %v778 = vpack.c.b16 %v769, %v768
        %vm788 = vcmask 130048
        %v790 = vsel %vm788, %v732, 0
        %792 = vmatprep.subr.bf16.mxu0 0
        %793 = vmatpush1.bf16.msra.mxu0 %v770
        %794 = vmatprep.subr.bf16.mxu0 0
        %795 = vmatpush1.bf16.msra.mxu0 %v771
        %796 = vmatprep.subr.bf16.mxu0 0
        %797 = vmatpush1.bf16.msra.mxu0 %v772
        %798 = vmatprep.subr.bf16.mxu0 0
        %799 = vmatpush1.bf16.msra.mxu0 %v773
        %800 = vmatprep.subr.bf16.mxu0 0
        %801 = vmatpush1.bf16.msra.mxu0 %v774
        %802 = vmatprep.subr.bf16.mxu0 0
        %803 = vmatpush1.bf16.msra.mxu0 %v775
        %804 = vmatprep.subr.bf16.mxu0 0
        %805 = vmatpush1.bf16.msra.mxu0 %v776
        %806 = vmatprep.subr.bf16.mxu0 0
        %807 = vmatpush1.bf16.msra.mxu0 %v777
        %808 = vmatprep.subr.bf16.mxu0 0
        %809 = vmatpush1.bf16.msra.mxu0 %v778
        %810 = vmatprep.subr.bf16.mxu0 0
        %811 = vmatpush1.bf16.msra.mxu0 0
        %812 = vmatprep.subr.bf16.mxu0 0
        %813 = vmatpush1.bf16.msra.mxu0 0
        %814 = vmatprep.subr.bf16.mxu0 0
        %815 = vmatpush1.bf16.msra.mxu0 0
        %816 = vmatprep.subr.bf16.mxu0 0
        %817 = vmatpush1.bf16.msra.mxu0 0
        %818 = vmatprep.subr.bf16.mxu0 0
        %819 = vmatpush1.bf16.msra.mxu0 0
        %820 = vmatprep.subr.bf16.mxu0 0
        %821 = vmatpush1.bf16.msra.mxu0 0
        %822 = vmatprep.subr.bf16.mxu0 0
        %823 = vmatpush1.bf16.msra.mxu0 0
        %824 = vmatprep.mubr.bf16.mxu0 %v790
        %825 = vmatmul.mubr.bf16.gmra.mrb[0].mxu0 %v720
        %v826 = vpop.f32.mrb[0].mxu0
        %v827 = vadd.f32 0.0, %v826
        %v828 = vpop.f32.mrb[0].mxu0
        %v829 = vpop.f32.mrb[0].mxu0
        %v830 = vadd.f32 0.0, %v829
        %v831 = vpop.f32.mrb[0].mxu0
        %832 = vdwg.mxu0
        %v852 = vunpack.c.l.b16 %v657
        %v853 = vunpack.c.l.b16 %v658
        %v854 = vunpack.c.l.b16 %v659
        %v855 = vunpack.c.l.b16 %v660
        %v856 = vunpack.c.l.b16 %v661
        %v857 = vunpack.c.l.b16 %v662
        %v858 = vunpack.c.l.b16 %v663
        %v859 = vunpack.c.l.b16 %v664
        %v860 = vunpack.c.l.b16 %v665
        %v861 = vunpack.c.l.b16 %v666
        %v862 = vunpack.c.l.b16 %v667
        %v863 = vunpack.c.l.b16 %v668
        %v864 = vunpack.c.l.b16 %v669
        %v865 = vunpack.c.l.b16 %v670
        %v866 = vunpack.c.l.b16 %v671
        %v867 = vunpack.c.l.b16 %v672
        %v868 = vunpack.c.l.b16 %v673
        %v869 = vunpack.c.l.b16 %v674
        %v870 = vpack.c.b16 %v853, %v852
        %v871 = vpack.c.b16 %v855, %v854
        %v872 = vpack.c.b16 %v857, %v856
        %v873 = vpack.c.b16 %v859, %v858
        %v874 = vpack.c.b16 %v861, %v860
        %v875 = vpack.c.b16 %v863, %v862
        %v876 = vpack.c.b16 %v865, %v864
        %v877 = vpack.c.b16 %v867, %v866
        %v878 = vpack.c.b16 %v869, %v868
        %v888 = vsel %vm788, %v705, 0
        %890 = vmatprep.subr.bf16.mxu0 0
        %891 = vmatpush1.bf16.msra.mxu0 %v870
        %892 = vmatprep.subr.bf16.mxu0 0
        %893 = vmatpush1.bf16.msra.mxu0 %v871
        %894 = vmatprep.subr.bf16.mxu0 0
        %895 = vmatpush1.bf16.msra.mxu0 %v872
        %896 = vmatprep.subr.bf16.mxu0 0
        %897 = vmatpush1.bf16.msra.mxu0 %v873
        %898 = vmatprep.subr.bf16.mxu0 0
        %899 = vmatpush1.bf16.msra.mxu0 %v874
        %900 = vmatprep.subr.bf16.mxu0 0
        %901 = vmatpush1.bf16.msra.mxu0 %v875
        %902 = vmatprep.subr.bf16.mxu0 0
        %903 = vmatpush1.bf16.msra.mxu0 %v876
        %904 = vmatprep.subr.bf16.mxu0 0
        %905 = vmatpush1.bf16.msra.mxu0 %v877
        %906 = vmatprep.subr.bf16.mxu0 0
        %907 = vmatpush1.bf16.msra.mxu0 %v878
        %908 = vmatprep.subr.bf16.mxu0 0
        %909 = vmatpush1.bf16.msra.mxu0 0
        %910 = vmatprep.subr.bf16.mxu0 0
        %911 = vmatpush1.bf16.msra.mxu0 0
        %912 = vmatprep.subr.bf16.mxu0 0
        %913 = vmatpush1.bf16.msra.mxu0 0
        %914 = vmatprep.subr.bf16.mxu0 0
        %915 = vmatpush1.bf16.msra.mxu0 0
        %916 = vmatprep.subr.bf16.mxu0 0
        %917 = vmatpush1.bf16.msra.mxu0 0
        %918 = vmatprep.subr.bf16.mxu0 0
        %919 = vmatpush1.bf16.msra.mxu0 0
        %920 = vmatprep.subr.bf16.mxu0 0
        %921 = vmatpush1.bf16.msra.mxu0 0
        %922 = vmatprep.mubr.bf16.mxu0 %v888
        %923 = vmatmul.mubr.bf16.gmra.mrb[0].mxu0 %v704
        %v924 = vpop.f32.mrb[0].mxu0
        %v925 = vadd.f32 %v827, %v924
        %v926 = vpop.f32.mrb[0].mxu0
        %v927 = vpop.f32.mrb[0].mxu0
        %v928 = vadd.f32 %v830, %v927
        %v929 = vpop.f32.mrb[0].mxu0
        %930 = vdwg.mxu0
        %v931 = vld [vmem:[#allocation2] sm:$0xee]
        %s932 = scalar_lea.vmem [#allocation9], 144
        %v933 = vld [vmem:[%s932] sm:$0xf]
        %v934 = vld [vmem:[%s932 + $0x4] sm:$0xf]
        %v935 = vld [vmem:[%s932 + $0x8] sm:$0xf]
        %v936 = vld [vmem:[%s932 + $0xc] sm:$0xf]
        %v937 = vld [vmem:[%s932 + $0x10] sm:$0xf]
        %v938 = vld [vmem:[%s932 + $0x14] sm:$0xf]
        %v939 = vld [vmem:[%s932 + $0x18] sm:$0xf]
        %v940 = vld [vmem:[%s932 + $0x1c] sm:$0xf]
        %v941 = vld [vmem:[%s932 + $0x20] sm:$0xf]
        %v942 = vld [vmem:[%s932 + $0x24] sm:$0xf]
        %v943 = vld [vmem:[%s932 + $0x28] sm:$0xf]
        %v944 = vld [vmem:[%s932 + $0x2c] sm:$0xf]
        %v945 = vld [vmem:[%s932 + $0x30] sm:$0xf]
        %v946 = vld [vmem:[%s932 + $0x34] sm:$0xf]
        %v947 = vld [vmem:[%s932 + $0x38] sm:$0xf]
        %v948 = vld [vmem:[%s932 + $0x3c] sm:$0xf]
        %v949 = vld [vmem:[%s932 + $0x40] sm:$0xf]
        %v950 = vld [vmem:[%s932 + $0x44] sm:$0xf]
        %v952 = vunpack.c.l.b16 %v931
        %v953 = vunpack.c.h.b16 %v931
        %v954 = vpack.c.b16 %v700, %v952
        %v955 = vpack.c.b16 %v701, %v953
        %vm956 = vcmask 1046528
        %v957 = vrot.slane %v954, 1
        %v958 = vrot.slane %v706, 1
        %v959 = vsel %vm956, %v957, %v958
        %v960 = vrot.slane %v955, 1
        %v961 = vrot.slane %v707, 1
        %v962 = vsel %vm956, %v960, %v961
        %v982 = vunpack.c.l.b16 %v933
        %v983 = vunpack.c.l.b16 %v934
        %v984 = vunpack.c.l.b16 %v935
        %v985 = vunpack.c.l.b16 %v936
        %v986 = vunpack.c.l.b16 %v937
        %v987 = vunpack.c.l.b16 %v938
        %v988 = vunpack.c.l.b16 %v939
        %v989 = vunpack.c.l.b16 %v940
        %v990 = vunpack.c.l.b16 %v941
        %v991 = vunpack.c.l.b16 %v942
        %v992 = vunpack.c.l.b16 %v943
        %v993 = vunpack.c.l.b16 %v944
        %v994 = vunpack.c.l.b16 %v945
        %v995 = vunpack.c.l.b16 %v946
        %v996 = vunpack.c.l.b16 %v947
        %v997 = vunpack.c.l.b16 %v948
        %v998 = vunpack.c.l.b16 %v949
        %v999 = vunpack.c.l.b16 %v950
        %v1000 = vpack.c.b16 %v983, %v982
        %v1001 = vpack.c.b16 %v985, %v984
        %v1002 = vpack.c.b16 %v987, %v986
        %v1003 = vpack.c.b16 %v989, %v988
        %v1004 = vpack.c.b16 %v991, %v990
        %v1005 = vpack.c.b16 %v993, %v992
        %v1006 = vpack.c.b16 %v995, %v994
        %v1007 = vpack.c.b16 %v997, %v996
        %v1008 = vpack.c.b16 %v999, %v998
        %v1019 = vsel %vm788, %v962, 0
        %1021 = vmatprep.subr.bf16.mxu0 0
        %1022 = vmatpush1.bf16.msra.mxu0 %v1000
        %1023 = vmatprep.subr.bf16.mxu0 0
        %1024 = vmatpush1.bf16.msra.mxu0 %v1001
        %1025 = vmatprep.subr.bf16.mxu0 0
        %1026 = vmatpush1.bf16.msra.mxu0 %v1002
        %1027 = vmatprep.subr.bf16.mxu0 0
        %1028 = vmatpush1.bf16.msra.mxu0 %v1003
        %1029 = vmatprep.subr.bf16.mxu0 0
        %1030 = vmatpush1.bf16.msra.mxu0 %v1004
        %1031 = vmatprep.subr.bf16.mxu0 0
        %1032 = vmatpush1.bf16.msra.mxu0 %v1005
        %1033 = vmatprep.subr.bf16.mxu0 0
        %1034 = vmatpush1.bf16.msra.mxu0 %v1006
        %1035 = vmatprep.subr.bf16.mxu0 0
        %1036 = vmatpush1.bf16.msra.mxu0 %v1007
        %1037 = vmatprep.subr.bf16.mxu0 0
        %1038 = vmatpush1.bf16.msra.mxu0 %v1008
        %1039 = vmatprep.subr.bf16.mxu0 0
        %1040 = vmatpush1.bf16.msra.mxu0 0
        %1041 = vmatprep.subr.bf16.mxu0 0
        %1042 = vmatpush1.bf16.msra.mxu0 0
        %1043 = vmatprep.subr.bf16.mxu0 0
        %1044 = vmatpush1.bf16.msra.mxu0 0
        %1045 = vmatprep.subr.bf16.mxu0 0
        %1046 = vmatpush1.bf16.msra.mxu0 0
        %1047 = vmatprep.subr.bf16.mxu0 0
        %1048 = vmatpush1.bf16.msra.mxu0 0
        %1049 = vmatprep.subr.bf16.mxu0 0
        %1050 = vmatpush1.bf16.msra.mxu0 0
        %1051 = vmatprep.subr.bf16.mxu0 0
        %1052 = vmatpush1.bf16.msra.mxu0 0
        %1053 = vmatprep.mubr.bf16.mxu0 %v1019
        %1054 = vmatmul.mubr.bf16.gmra.mrb[0].mxu0 %v959
        %v1055 = vpop.f32.mrb[0].mxu0
        %v1056 = vadd.f32 0.0, %v1055
        %v1057 = vpop.f32.mrb[0].mxu0
        %v1058 = vpop.f32.mrb[0].mxu0
        %v1059 = vadd.f32 0.0, %v1058
        %v1060 = vpop.f32.mrb[0].mxu0
        %1061 = vdwg.mxu0
        %v1062 = vadd.f32 %v925, %v1056
        %v1063 = vadd.f32 %v928, %v1059
        %v1064 = vld [vmem:[#allocation11] sm:$0x1]
        %v1066 = vlaneseq
        %v1067 = vshrl.u32 %v1066, 7
        %v1068 = vsub.s32 0, %v1067
        %v1069 = vrot.slane %v1064, %v1068
        %v1071 = vadd.f32 %v1062, %v1069
        %v1072 = vadd.f32 %v1063, %v1069
        %v1073 = vmax.f32 %v1071, 0.0
        %v1074 = vmax.f32 %v1072, 0.0
        %v1075 = vpack.c.bf16 %v1074, %v1073
        %v1077 = vunpack.c.l.b16 %v1075
        %v1078 = vunpack.c.h.b16 %v1075
        %v1079 = vpack.c.b16 %v1077, %v1077
        %v1080 = vpack.c.b16 %v1078, %v1078
        %1083 = vst [vmem:[%s310] sm:$0xf] %v1079
        %1084 = vst [vmem:[%s310 + $0x4] sm:$0xf] %v1080
        %s1085 = sand.u32 %s156, 1
        %s1086 = scalar_lea.sflag [#allocation5], %s1085
        %s1087 = sand.u32 %s156, 1
        %s1088 = smul.addr %s1087, 8
        %s1089 = scalar_lea.vmem [#allocation12], %s1088
        // Predicated region
        $region61: #{tpu_custom_call.1} parent=39 // pred_check
          %p1090 = pneg %p166
        $region62: #{tpu_custom_call.1} parent=39 // pred_check_branch
          %1092 = sbr.rel (%p1090) target = $region64
        $region63: #{tpu_custom_call.1} parent=39 // pred_region
          %s1093 = smul.u32 2, %s29
          %s1095 = ssub.s32 128, 128
          %1096 = vsyncadd %s1086, %s1095
          %s1097 = smul.addr %s28, 2
          %s1098 = sadd.s32 %s1093, %s1097
          %s1099 = smul.addr %s1098, 64
          %s1100 = scalar_lea.hbm %s5, %s1099
          %s1101 = sshll.u32 %s1089, 4
          %s1102 = int_to_ptr.vmem [resolvable:$true] %s1101
          %1107 = dma.vmem_to_hbm [thread:$0]  %s1102, 128, %s1100, %s1086, 64, 64, 4
        $region64: #{tpu_custom_call.1} parent=39 // pred_fallthru
          _
      $region40: #{tpu_custom_call.1} parent=5 // pred_fallthru
        _
      %p1108 = scmp.le.s32.totalorder 2, %s19
      // Predicated region
      $region65: #{tpu_custom_call.1} parent=5 // pred_check
        %p1109 = pneg %p1108
      $region66: #{tpu_custom_call.1} parent=5 // pred_check_branch
        %1111 = sbr.rel (%p1109) target = $region68
      $region67: #{tpu_custom_call.1} parent=5 // pred_region
        %s1112 = ssub.s32 %s19, 2
        // Predicated region
        $region69: #{tpu_custom_call.1} parent=67 // pred_check
          %p1113 = pneg %p172
        $region70: #{tpu_custom_call.1} parent=67 // pred_check_branch
          %1115 = sbr.rel (%p1113) target = $region72
        $region71: #{tpu_custom_call.1} parent=67 // pred_region
          %s1116 = sand.u32 %s157, 1
          %s1117 = scalar_lea.sflag [#allocation5], %s1116
          %s1118 = sand.u32 %s157, 1
          %s1119 = smul.addr %s1118, 8
          %s1120 = scalar_lea.vmem [#allocation12], %s1119
          %1121 = dma.done %s1117, 128
        $region72: #{tpu_custom_call.1} parent=67 // pred_fallthru
          _
      $region68: #{tpu_custom_call.1} parent=5 // pred_fallthru
        _
    $region6: #{tpu_custom_call.1} parent=1 // loop_footer
      %s23 = sadd.s32 1, %s19
    $region7: #{tpu_custom_call.1} parent=1 // loop_footer_branch
      %18 = sbr.rel target = $region3
    $region8: #{tpu_custom_call.1} parent=1 // loop_exit
      _
    %1122 = vsyncpa [#allocation4], 1
    %s1123 = scalar_lea.sflag [#allocation4], 1
    %1124 = vsyncpa %s1123, 1
    %1125 = vsyncpa [#allocation7], 1
    %1126 = vsyncpa [#allocation10], 1
    %1127 = vsyncpa [#allocation5], 1
    %s1128 = scalar_lea.sflag [#allocation5], 1
    %1129 = vsyncpa %s1128, 1

</llo_original>
